<compile_context>
chip_gen: v7x
topology: tpu7x:2x2x1
jax: 0.10.0
libtpu: 0.0.40
codegen_flags: <defaults>
</compile_context>

<pallas_src>
import math
import functools

import jax
import jax.numpy as jnp
from jax.experimental import pallas as pl
from jax.experimental.pallas import tpu as pltpu


# ---------------------------------------------------------------------------
# pe buffer construction (glue, mirrors the PyTorch __init__ exactly)
# ---------------------------------------------------------------------------
def make_positional_encoding_table(d_model: int, max_len: int,
                                   dtype=jnp.float32) -> jnp.ndarray:
    position = jnp.arange(0, max_len, dtype=jnp.float32)[:, None]          # (max_len, 1)
    div_term = jnp.exp(
        jnp.arange(0, d_model, 2, dtype=jnp.float32) * (-math.log(10000.0) / d_model)
    )                                                                       # (d_model/2,)
    pe = jnp.zeros((max_len, d_model), dtype=jnp.float32)
    pe = pe.at[:, 0::2].set(jnp.sin(position * div_term))
    pe = pe.at[:, 1::2].set(jnp.cos(position * div_term))
    # unsqueeze(0).transpose(0, 1) -> (max_len, 1, d_model); store in the
    # compute dtype once at init so the kernel never re-casts / re-reads f32.
    return pe[:, None, :].astype(dtype)


# ---------------------------------------------------------------------------
# Helpers
# ---------------------------------------------------------------------------
def _sublane_pack(dtype) -> int:
    """Rows per packed sublane group: 8 for 32-bit, 16 for bf16, 32 for int8."""
    return max(8, 32 // jnp.dtype(dtype).itemsize)


def _choose_row_tile(S: int, row_bytes: int, dtype,
                     target_bytes: int = 4 * 1024 * 1024) -> int:
    """Rows per block: ~4 MiB of x per block, rounded to the sublane pack."""
    ts = max(1, target_bytes // max(row_bytes, 1))
    if ts >= S:
        return S
    pack = _sublane_pack(dtype)
    ts = max(pack, (ts // pack) * pack)
    return min(ts, S)


def _hash_u32(x):
    """lowbias32 integer mixer (portable: plain shifts/xors/muls on uint32)."""
    x = x ^ (x >> jnp.uint32(16))
    x = x * jnp.uint32(0x7FEB352D)
    x = x ^ (x >> jnp.uint32(15))
    x = x * jnp.uint32(0x846CA68B)
    x = x ^ (x >> jnp.uint32(16))
    return x


def _add_pe(x_ref, pe_ref, batch):
    xb = x_ref[...]
    pe_b = pe_ref[...].astype(xb.dtype)   # no-op when pe is stored in x.dtype
    if xb.ndim == 3:
        # (ts, B, D) + (ts, 1, D): native sublane/vreg broadcast.
        return xb + pe_b
    if batch == 1:
        return xb + pe_b
    # Lane-dense fallback: replicate the D-wide pe row across the collapsed
    # (S, B*D) layout.  VPU/XLU have slack in a mem-bound kernel.
    return xb + jnp.concatenate([pe_b] * batch, axis=-1)


# ---------------------------------------------------------------------------
# Kernels
# ---------------------------------------------------------------------------
def _pe_add_kernel(x_ref, pe_ref, o_ref, *, batch):
    o_ref[...] = _add_pe(x_ref, pe_ref, batch).astype(o_ref.dtype)


def _pe_add_dropout_kernel(seed_ref, x_ref, pe_ref, o_ref, *,
                           batch, d_model, keep_prob, row_tile):
    # Training-mode inverted dropout after the positional-encoding add.
    y = _add_pe(x_ref, pe_ref, batch)
    shape = y.shape

    # Counter-based RNG: hash of the global flat element index + seed.
    # Grid-invariant (mask does not depend on the tile size) and portable
    # (no TPU-only PRNG primitives -> also runs in interpret mode).
    row0 = (pl.program_id(0) * row_tile).astype(jnp.uint32)
    row = jax.lax.broadcasted_iota(jnp.uint32, shape, 0) + row0
    lane = jax.lax.broadcasted_iota(jnp.uint32, shape, y.ndim - 1)
    if y.ndim == 3:
        col = jax.lax.broadcasted_iota(jnp.uint32, shape, 1) * jnp.uint32(d_model) + lane
    else:
        col = lane
    flat = row * jnp.uint32(batch * d_model) + col

    seed_mix = _hash_u32(seed_ref[0].astype(jnp.uint32) ^ jnp.uint32(0x9E3779B9))
    bits = _hash_u32(flat ^ seed_mix)

    drop_p = 1.0 - keep_prob
    thresh = jnp.uint32(min(int(round(drop_p * 2.0 ** 32)), 2 ** 32 - 1))
    keep = bits >= thresh

    # Scale in f32 (avoids bf16 rounding bias on kept activations); single
    # cast at the store.
    scaled = y.astype(jnp.float32) * jnp.float32(1.0 / keep_prob)
    o_ref[...] = jnp.where(keep, scaled, jnp.float32(0.0)).astype(o_ref.dtype)


# ---------------------------------------------------------------------------
# Wrapper
# ---------------------------------------------------------------------------
def positional_encoding(x, pe, *, dropout_p: float = 0.1,
                        training: bool = False, seed: int = 0):
    """x: (S, B, D);  pe: (max_len, 1, D).  Returns dropout(x + pe[:S])."""
    S, B, D = x.shape
    max_len = pe.shape[0]
    assert pe.shape == (max_len, 1, D) and max_len >= S

    pack = _sublane_pack(x.dtype)
    use_3d = (D % 128 == 0) and (B % pack == 0)

    row_bytes = B * D * jnp.dtype(x.dtype).itemsize
    ts = _choose_row_tile(S, row_bytes, x.dtype)
    grid = (pl.cdiv(S, ts),)

    if use_3d:
        # Native 3D blocks: pe broadcast over the batch axis is free.
        x_in = x
        pe_in = pe                                   # (max_len, 1, D), no copy
        x_spec = pl.BlockSpec((ts, B, D), lambda i: (i, 0, 0))
        pe_spec = pl.BlockSpec((ts, 1, D), lambda i: (i, 0, 0))
        out_spec = pl.BlockSpec((ts, B, D), lambda i: (i, 0, 0))
        out_shape = jax.ShapeDtypeStruct((S, B, D), x.dtype)
    else:
        # Lane-dense collapse of minor dims (free reshape); pe keeps its full
        # table — the index_map picks the rows, so no per-call pe[:S] copy.
        x_in = x.reshape(S, B * D)
        pe_in = pe.reshape(max_len, D)               # free squeeze of size-1 dim
        x_spec = pl.BlockSpec((ts, B * D), lambda i: (i, 0))
        pe_spec = pl.BlockSpec((ts, D), lambda i: (i, 0))
        out_spec = pl.BlockSpec((ts, B * D), lambda i: (i, 0))
        out_shape = jax.ShapeDtypeStruct((S, B * D), x.dtype)

    cparams = pltpu.CompilerParams(
        dimension_semantics=("parallel",),           # shards S across v7x's 2 TCs
        vmem_limit_bytes=48 * 1024 * 1024,           # headroom under v7x's 64 MiB
    )

    if (not training) or dropout_p == 0.0:
        # Eval-mode dropout == identity (matches nn.Dropout semantics in eval).
        out = pl.pallas_call(
            functools.partial(_pe_add_kernel, batch=B),
            out_shape=out_shape,
            grid=grid,
            in_specs=[x_spec, pe_spec],
            out_specs=out_spec,
            compiler_params=cparams,
        )(x_in, pe_in)
    else:
        seed_arr = jnp.asarray([seed], dtype=jnp.int32)
        out = pl.pallas_call(
            functools.partial(_pe_add_dropout_kernel, batch=B, d_model=D,
                              keep_prob=1.0 - dropout_p, row_tile=ts),
            out_shape=out_shape,
            grid=grid,
            in_specs=[pl.BlockSpec(memory_space=pltpu.MemorySpace.SMEM),
                      x_spec, pe_spec],
            out_specs=out_spec,
            compiler_params=cparams,
        )(seed_arr, x_in, pe_in)

    return out.reshape(S, B, D)


# ---------------------------------------------------------------------------
# Demo / smoke test
# ---------------------------------------------------------------------------
if __name__ == "__main__":
    key = jax.random.PRNGKey(0)

    # ---- Shapes from the module (small): lane-dense 2D path -------------
    d_model, max_len, seq_len, batch, dropout_p = 32, 16, 8, 2, 0.1
    x = jax.random.normal(key, (seq_len, batch, d_model), dtype=jnp.float32)
    pe = make_positional_encoding_table(d_model, max_len, dtype=x.dtype)

    # Eval-mode forward (deterministic): x + pe[:S]
    out_eval = jax.block_until_ready(
        positional_encoding(x, pe, dropout_p=dropout_p, training=False))
    ref = x + pe[:seq_len].astype(x.dtype)
    assert out_eval.shape == (seq_len, batch, d_model)
    assert jnp.allclose(out_eval, ref, atol=1e-6, rtol=1e-6)

    # Training-mode forward: inverted dropout on (x + pe[:S]).  Every element
    # must be either 0 (dropped) or ref / keep_prob (kept).
    out_train = jax.block_until_ready(
        positional_encoding(x, pe, dropout_p=dropout_p, training=True, seed=1234))
    keep_prob = 1.0 - dropout_p
    ok = jnp.where(out_train == 0.0, True,
                   jnp.isclose(out_train, ref / keep_prob, atol=1e-5, rtol=1e-5))
    assert out_train.shape == (seq_len, batch, d_model)
    assert bool(jnp.all(ok))

    # ---- Tile-aligned shapes: native 3D broadcast path -------------------
    d2, b2, s2 = 128, 8, 8
    x2 = jax.random.normal(jax.random.PRNGKey(1), (s2, b2, d2), dtype=jnp.float32)
    pe2 = make_positional_encoding_table(d2, max_len, dtype=x2.dtype)
    out2 = jax.block_until_ready(
        positional_encoding(x2, pe2, dropout_p=dropout_p, training=False))
    ref2 = x2 + pe2[:s2].astype(x2.dtype)
    assert jnp.allclose(out2, ref2, atol=1e-6, rtol=1e-6)
    out2t = jax.block_until_ready(
        positional_encoding(x2, pe2, dropout_p=dropout_p, training=True, seed=7))
    ok2 = jnp.where(out2t == 0.0, True,
                    jnp.isclose(out2t, ref2 / keep_prob, atol=1e-5, rtol=1e-5))
    assert bool(jnp.all(ok2))

    # TODO(synk): training-mode dropout uses a counter-based hash RNG, so its
    # mask is not bit-identical to torch's dropout RNG (statistically equivalent).
    print("KERNEL_OK")
</pallas_src>

<mosaic_0001>
module attributes {stable_mosaic.version = 11 : i64} {
  func.func @_pe_add_kernel(%arg0: i32, %arg1: memref<8x64xf32, #tpu.memory_space<vmem>>, %arg2: memref<8x32xf32, #tpu.memory_space<vmem>>, %arg3: memref<8x64xf32, #tpu.memory_space<vmem>>) attributes {dimension_semantics = [#tpu.dimension_semantics<parallel>], iteration_bounds = array<i64: 1>, scalar_prefetch = 0 : i64, scratch_operands = 0 : i64, tpu.core_type = #tpu.core_type<tc>, window_params = [{transform_indices = @transform_0, window_bounds = array<i64: 8, 64>}, {transform_indices = @transform_1, window_bounds = array<i64: 8, 32>}, {transform_indices = @transform_2, window_bounds = array<i64: 8, 64>}]} {
    %c0 = arith.constant 0 : index
    %c0_0 = arith.constant 0 : index
    %0 = vector.load %arg1[%c0, %c0_0] : memref<8x64xf32, #tpu.memory_space<vmem>>, vector<8x64xf32>
    %c0_1 = arith.constant 0 : index
    %c0_2 = arith.constant 0 : index
    %1 = vector.load %arg2[%c0_1, %c0_2] : memref<8x32xf32, #tpu.memory_space<vmem>>, vector<8x32xf32>
    %2 = tpu.concatenate %1, %1 in 1 : vector<8x32xf32>, vector<8x32xf32> -> vector<8x64xf32>
    %3 = arith.addf %0, %2 : vector<8x64xf32>
    %c0_3 = arith.constant 0 : index
    %c0_4 = arith.constant 0 : index
    %4 = vector.load %arg3[%c0_3, %c0_4] : memref<8x64xf32, #tpu.memory_space<vmem>>, vector<8x64xf32>
    tpu.vector_store %arg3[%c0_3, %c0_4], %3 {strides = array<i32>} : memref<8x64xf32, #tpu.memory_space<vmem>>, vector<8x64xf32>,
    return
  }
  func.func @transform_0(%arg0: i32) -> (i32, i32) {
    %c0_i32 = arith.constant 0 : i32
    %c0_i32_0 = arith.constant 0 : i32
    return %arg0, %c0_i32 : i32, i32
  }
  func.func @transform_1(%arg0: i32) -> (i32, i32) {
    %c0_i32 = arith.constant 0 : i32
    %c0_i32_0 = arith.constant 0 : i32
    return %arg0, %c0_i32 : i32, i32
  }
  func.func @transform_2(%arg0: i32) -> (i32, i32) {
    %c0_i32 = arith.constant 0 : i32
    %c0_i32_0 = arith.constant 0 : i32
    return %arg0, %c0_i32 : i32, i32
  }
}

</mosaic_0001>

<llo_original>
// kernel: tpu_custom_call.1
$region0: #{tpu_custom_call.1}
  #allocation0 [shape = 'u32[]', space=smem, size = 0x4, offset = 0x4, fixed_abs, tag = 'smem constant byte address 0x4 - core index']
  #allocation1 [shape = 'u32[144,128]{1,0:T(1,128)}', space=vmem, size = 0x12000, scoped, tag = 'internal scratch']
  %s0 = inlined_call_operand.hbm [shape: f32[8,64], index: 0, kind: input, shape index: {}]
  %s1 = inlined_call_operand.hbm [shape: f32[16,32], index: 1, kind: input, shape index: {}]
  %s2 = inlined_call_operand.hbm [shape: f32[8,64], index: 2, kind: output, shape index: {}]
  %s3 = sld [smem:[#allocation0]]
  $region26: #{tpu_custom_call.1} parent=0
    _
  %s5 = ssub.s32 1, %s3
  %s6 = scalar_select 0, %s5, %s3
  $region1: #{tpu_custom_call.1} parent=0
    #allocation2 [shape = 'u8[4096]{0}', space=vmem, size = 0x1000, scoped, tag = 'input window, operand 0, single buffered']
    #allocation3 [shape = 's32[1]{0}', space=sflag, size = 0x4, scoped, tag = 'scoped memory for tpu_custom_call.1']
    #allocation4 [shape = 's32[1]{0}', space=sflag, size = 0x4, scoped, tag = 'scoped memory for tpu_custom_call.1']
    #allocation5 [shape = 'u8[4096]{0}', space=vmem, size = 0x1000, scoped, tag = 'input window, operand 1, single buffered']
    #allocation6 [shape = 's32[1]{0}', space=sflag, size = 0x4, scoped, tag = 'scoped memory for tpu_custom_call.1']
    #allocation7 [shape = 'u8[4096]{0}', space=vmem, size = 0x1000, scoped, tag = 'output window, operand 0, single buffered']
    %7 = vsyncpa [#allocation3], 0
    %8 = vsyncpa [#allocation6], 0
    %9 = vsyncpa [#allocation4], 0
    // Predicated region
    $region2: #{tpu_custom_call.1} parent=1 // pred_check
      _
    $region3: #{tpu_custom_call.1} parent=1 // pred_check_branch
      %11 = sbr.rel (0) target = $region5
    $region4: #{tpu_custom_call.1} parent=1 // pred_region
      %s13 = ssub.s32 128, 128
      %14 = vsyncadd [#allocation3], %s13
      %s16 = sshll.u32 [#allocation2], 4
      %s17 = int_to_ptr.vmem [resolvable:$true] %s16
      %19 = dma.hbm_to_vmem [thread:$0]  %s0, 128, %s17, [#allocation3]
    $region5: #{tpu_custom_call.1} parent=1 // pred_fallthru
      _
    // Predicated region
    $region6: #{tpu_custom_call.1} parent=1 // pred_check
      _
    $region7: #{tpu_custom_call.1} parent=1 // pred_check_branch
      %21 = sbr.rel (0) target = $region9
    $region8: #{tpu_custom_call.1} parent=1 // pred_region
      %s23 = ssub.s32 128, 128
      %24 = vsyncadd [#allocation6], %s23
      %s26 = sshll.u32 [#allocation5], 4
      %s27 = int_to_ptr.vmem [resolvable:$true] %s26
      %29 = dma.hbm_to_vmem [thread:$0]  %s1, 128, %s27, [#allocation6]
    $region9: #{tpu_custom_call.1} parent=1 // pred_fallthru
      _
    // Predicated region
    $region10: #{tpu_custom_call.1} parent=1 // pred_check
      _
    $region11: #{tpu_custom_call.1} parent=1 // pred_check_branch
      %31 = sbr.rel (0) target = $region13
    $region12: #{tpu_custom_call.1} parent=1 // pred_region
      %32 = dma.done [#allocation3], 128
    $region13: #{tpu_custom_call.1} parent=1 // pred_fallthru
      _
    // Predicated region
    $region14: #{tpu_custom_call.1} parent=1 // pred_check
      _
    $region15: #{tpu_custom_call.1} parent=1 // pred_check_branch
      %34 = sbr.rel (0) target = $region17
    $region16: #{tpu_custom_call.1} parent=1 // pred_region
      %35 = dma.done [#allocation6], 128
    $region17: #{tpu_custom_call.1} parent=1 // pred_fallthru
      _
    %v36 = vld [vmem:[#allocation2] sm:$0xff]
    %v37 = vld [vmem:[#allocation5] sm:$0xff]
    %39 = vrot.lane.b32.xlu0 %v37, 32
    %v40 = vpop.permute.xlu0 %39
    %vm42 = vcmask 261120
    %v43 = vsel %vm42, %v37, %v40
    %v44 = vadd.f32 %v36, %v43
    %vm45 = vcmask 523264
    %46 = vst.msk [vmem:[#allocation7] sm:$0xff] %vm45, %v44
    // Predicated region
    $region18: #{tpu_custom_call.1} parent=1 // pred_check
      _
    $region19: #{tpu_custom_call.1} parent=1 // pred_check_branch
      %48 = sbr.rel (0) target = $region21
    $region20: #{tpu_custom_call.1} parent=1 // pred_region
      %s50 = ssub.s32 128, 128
      %51 = vsyncadd [#allocation4], %s50
      %s53 = sshll.u32 [#allocation7], 4
      %s54 = int_to_ptr.vmem [resolvable:$true] %s53
      %56 = dma.vmem_to_hbm [thread:$0]  %s54, 128, %s2, [#allocation4]
    $region21: #{tpu_custom_call.1} parent=1 // pred_fallthru
      _
    // Predicated region
    $region22: #{tpu_custom_call.1} parent=1 // pred_check
      _
    $region23: #{tpu_custom_call.1} parent=1 // pred_check_branch
      %58 = sbr.rel (0) target = $region25
    $region24: #{tpu_custom_call.1} parent=1 // pred_region
      %59 = dma.done [#allocation4], 128
    $region25: #{tpu_custom_call.1} parent=1 // pred_fallthru
      _
    %60 = vsyncpa [#allocation3], 1
    %61 = vsyncpa [#allocation6], 1
    %62 = vsyncpa [#allocation4], 1

</llo_original>
